<compile_context>
chip_gen: v5e
topology: v5e:2x2
jax: 0.10.0
libtpu: 0.0.40
codegen_flags: <defaults>
</compile_context>

<pallas_src>
import jax
import jax.numpy as jnp
from jax.experimental import pallas as pl
from jax.experimental.pallas import tpu as pltpu


def _round_up(v, m):
    return ((v + m - 1) // m) * m


def _vmem_capacity_bytes():
    """Physical VMEM per TensorCore; conservative (v7x-sized) fallback."""
    try:
        return int(pltpu.get_tpu_info().vmem_capacity_bytes)
    except Exception:
        return 64 * 1024 * 1024


def _choose_tiles(B, C, HW, itemsize, thw=None, bblk=None):
    """Pick (batch-pack, spatial-tile) sizes: biggest blocks that fit VMEM."""
    vmem_cap = _vmem_capacity_bytes()
    # Per-buffer hard cap: ~1/5 of physical VMEM leaves room for the 2x
    # double-buffered input, weights, scratch, output and headroom even on
    # v7x (64 MiB).  Target ~8 MiB per buffer (measured roofline fraction
    # climbs from ~63% at 256-wide tiles to ~85%+ at 512-1024-wide).
    hard_cap = max(1 << 20, vmem_cap // 5)
    target_x_block = min(8 * 1024 * 1024, hard_cap)

    if thw is None:
        if C * HW * itemsize <= target_x_block:
            thw = HW  # one spatial tile, no masking needed
        else:
            thw = ((target_x_block // (C * itemsize)) // 512) * 512
            thw = max(thw, 512)
            if C * thw * itemsize > hard_cap:  # very large C: shrink below 512
                thw = max(128, ((hard_cap // (C * itemsize)) // 128) * 128)
            thw = min(thw, HW)
    if thw != HW:
        assert thw % 128 == 0, "spatial tile must be a multiple of 128 lanes"

    if bblk is None:
        per_block = C * thw * itemsize
        max_pack = max(1, min(B, target_x_block // max(per_block, 1)))
        if B >= 2:
            # Keep >= 2 batch-grid entries so both v7x TensorCores get work.
            max_pack = max(1, min(max_pack, B // 2))
        bblk = 1
        for d in range(min(B, max_pack), 0, -1):  # largest divisor of B
            if B % d == 0:
                bblk = d
                break
    assert B % bblk == 0
    return bblk, thw


def channel_attention(x, w1, w2, *, thw=None, bblk=None):
    """x: (B, C, H, W).  w1: (C//16, C), w2: (C, C//16) (bias-free 1x1 convs).

    Returns the channel-attention map of shape (B, C, 1, 1), matching PyTorch.
    """
    B, C, H, W = x.shape
    hidden = w1.shape[0]
    HW = H * W
    itemsize = jnp.dtype(x.dtype).itemsize
    w_itemsize = jnp.dtype(w1.dtype).itemsize
    x_flat = x.reshape(B, C, HW)

    bblk, thw = _choose_tiles(B, C, HW, itemsize, thw=thw, bblk=bblk)
    num_hw = (HW + thw - 1) // thw
    needs_mask = (HW % thw) != 0
    inv_hw = 1.0 / float(HW)  # Python float -> jaxpr literal (not a captured const)

    def kernel(x_ref, w1_ref, w2_ref, o_ref, sum_ref, max_ref, pooled_ref):
        # x_ref: (bblk, C, thw)   w1_ref: (hidden, C)   w2_ref: (C, hidden)
        # o_ref: (bblk, C, 1)
        # sum_ref/max_ref: (bblk, C, 1) f32 scratch, pooled_ref: (C, 2*bblk) f32
        hw_i = pl.program_id(1)
        last = num_hw - 1

        def accumulate(part_sum, part_max):
            @pl.when(hw_i == 0)
            def _():
                sum_ref[...] = part_sum
                max_ref[...] = part_max

            @pl.when(hw_i > 0)
            def _():
                sum_ref[...] = sum_ref[...] + part_sum
                max_ref[...] = jnp.maximum(max_ref[...], part_max)

        def reduce_tile(masked):
            x_raw = x_ref[...]                          # (bblk, C, thw) input dtype
            x_f32 = x_raw.astype(jnp.float32)
            if masked:
                # Ragged last tile: neutralize padded lanes (0 for sum, -inf for max).
                lane = jax.lax.broadcasted_iota(jnp.int32, (1, 1, thw), 2)
                valid = (hw_i * thw + lane) < HW
                x_sum_in = jnp.where(valid, x_f32, 0.0)
                x_max_in = jnp.where(valid, x_raw, -jnp.inf)
            else:
                x_sum_in = x_f32
                x_max_in = x_raw
            part_sum = jnp.sum(x_sum_in, axis=-1, keepdims=True)              # (bblk, C, 1) f32
            part_max = jnp.max(x_max_in, axis=-1, keepdims=True).astype(jnp.float32)
            accumulate(part_sum, part_max)

        if needs_mask:
            # Steady-state tiles: unmasked path (keeps VALU off the v7x critical path).
            @pl.when(hw_i < last)
            def _():
                reduce_tile(masked=False)

            @pl.when(hw_i == last)
            def _():
                reduce_tile(masked=True)
        else:
            reduce_tile(masked=False)

        @pl.when(hw_i == last)
        def _():
            w1k = w1_ref[...].astype(jnp.float32)       # (hidden, C)
            w2k = w2_ref[...].astype(jnp.float32)       # (C, hidden)
            # Pack avg (cols [0, bblk)) and max (cols [bblk, 2*bblk)) pools into
            # a single RHS so the shared MLP is exactly two MXU matmuls.
            for b in range(bblk):                       # static unroll, bblk small
                pooled_ref[:, b:b + 1] = sum_ref[b] * inv_hw
                pooled_ref[:, bblk + b:bblk + b + 1] = max_ref[b]
            h = jnp.dot(w1k, pooled_ref[...], preferred_element_type=jnp.float32)  # (hidden, 2*bblk)
            h = jnp.maximum(h, 0.0)                                                # ReLU
            y = jnp.dot(w2k, h, preferred_element_type=jnp.float32)                # (C, 2*bblk)
            att = jax.nn.sigmoid(y[:, :bblk] + y[:, bblk:])                        # (C, bblk)
            for b in range(bblk):
                o_ref[b] = att[:, b:b + 1].astype(o_ref.dtype)

    # ---- Derive vmem_limit_bytes from the actual VMEM budget -----------------
    thw_pad = _round_up(thw, 128)
    c_pad = _round_up(C, 8)
    x_block = bblk * c_pad * thw_pad * itemsize
    w_block = (_round_up(hidden, 8) * _round_up(C, 128)
               + c_pad * _round_up(hidden, 128)) * w_itemsize
    scratch = 2 * bblk * c_pad * 128 * 4 + c_pad * _round_up(2 * bblk, 128) * 4
    out_block = bblk * c_pad * 128 * itemsize
    need = 2 * x_block + 2 * w_block + scratch + 2 * out_block
    vmem_limit = int(min(max(need + (2 << 20), 16 << 20), 64 << 20))

    out = pl.pallas_call(
        kernel,
        out_shape=jax.ShapeDtypeStruct((B, C, 1), x.dtype),
        grid_spec=pltpu.PrefetchScalarGridSpec(
            num_scalar_prefetch=0,
            grid=(B // bblk, num_hw),
            in_specs=[
                pl.BlockSpec((bblk, C, thw), lambda i, j: (i, 0, j)),
                pl.BlockSpec((hidden, C), lambda i, j: (0, 0)),
                pl.BlockSpec((C, hidden), lambda i, j: (0, 0)),
            ],
            out_specs=pl.BlockSpec((bblk, C, 1), lambda i, j: (i, 0, 0)),
            scratch_shapes=[
                pltpu.VMEM((bblk, C, 1), jnp.float32),    # running sum
                pltpu.VMEM((bblk, C, 1), jnp.float32),    # running max
                pltpu.VMEM((C, 2 * bblk), jnp.float32),   # packed MLP RHS
            ],
        ),
        compiler_params=pltpu.CompilerParams(
            dimension_semantics=("parallel", "arbitrary"),
            vmem_limit_bytes=vmem_limit,
        ),
        cost_estimate=pl.CostEstimate(
            flops=2 * B * C * HW + 8 * B * C * hidden,
            transcendentals=B * C,
            bytes_accessed=(B * C * HW + B * C) * itemsize + 2 * 2 * hidden * C * w_itemsize,
        ),
    )(x_flat, w1, w2)
    return out.reshape(B, C, 1, 1)


def reference(x, w1, w2):
    xf = x.astype(jnp.float32)
    avg = jnp.mean(xf, axis=(2, 3))                  # (B, C)
    mx = jnp.max(xf, axis=(2, 3))                    # (B, C)

    def mlp(v):
        h = jnp.maximum(v @ w1.T, 0.0)
        return h @ w2.T

    return jax.nn.sigmoid(mlp(avg) + mlp(mx))[:, :, None, None]


if __name__ == "__main__":
    # in_planes must be >= 16 so in_planes // 16 >= 1 (as in the PyTorch module).
    B, C = 2, 32
    hidden = C // 16

    key = jax.random.PRNGKey(0)
    kx, k1, k2, kx2 = jax.random.split(key, 4)

    # 1x1 conv weights (bias=False), squeezed from (out, in, 1, 1) to (out, in).
    w1 = jax.random.normal(k1, (hidden, C), dtype=jnp.float32) * 0.1   # fc1
    w2 = jax.random.normal(k2, (C, hidden), dtype=jnp.float32) * 0.1   # fc2

    # Case 1: small feature map -> single spatial tile, no masking.
    x = jax.random.normal(kx, (B, C, 16, 16), dtype=jnp.float32)
    out = jax.block_until_ready(channel_attention(x, w1, w2))
    ref = reference(x, w1, w2)
    assert out.shape == (B, C, 1, 1)
    assert jnp.allclose(out, ref, atol=1e-5, rtol=1e-5)

    # Case 2: force spatial tiling with a ragged remainder tile (THW=128 over
    # HW=400) to exercise the streaming reduction + last-tile-only masking.
    x2 = jax.random.normal(kx2, (B, C, 20, 20), dtype=jnp.float32)
    out2 = jax.block_until_ready(channel_attention(x2, w1, w2, thw=128))
    ref2 = reference(x2, w1, w2)
    assert out2.shape == (B, C, 1, 1)
    assert jnp.allclose(out2, ref2, atol=1e-5, rtol=1e-5)

    print("KERNEL_OK")
</pallas_src>

<mosaic_0001>
module attributes {stable_mosaic.version = 11 : i64} {
  func.func @kernel(%arg0: i32, %arg1: i32, %arg2: memref<1x32x256xf32, #tpu.memory_space<vmem>>, %arg3: memref<2x32xf32, #tpu.memory_space<vmem>>, %arg4: memref<32x2xf32, #tpu.memory_space<vmem>>, %arg5: memref<1x32x1xf32, #tpu.memory_space<vmem>>, %arg6: memref<1x32x1xf32, #tpu.memory_space<vmem>>, %arg7: memref<1x32x1xf32, #tpu.memory_space<vmem>>, %arg8: memref<32x2xf32, #tpu.memory_space<vmem>>) attributes {dimension_semantics = [#tpu.dimension_semantics<parallel>, #tpu.dimension_semantics<arbitrary>], iteration_bounds = array<i64: 2, 1>, scalar_prefetch = 0 : i64, scratch_operands = 3 : i64, tpu.core_type = #tpu.core_type<tc>, window_params = [{transform_indices = @transform_0, window_bounds = array<i64: 1, 32, 256>}, {pipeline_mode = #tpu.pipeline_mode<synchronous>, transform_indices = @transform_1, window_bounds = array<i64: 2, 32>}, {pipeline_mode = #tpu.pipeline_mode<synchronous>, transform_indices = @transform_2, window_bounds = array<i64: 32, 2>}, {transform_indices = @transform_3, window_bounds = array<i64: 1, 32, 1>}]} {
    %c0 = arith.constant 0 : index
    %c0_0 = arith.constant 0 : index
    %c0_1 = arith.constant 0 : index
    %0 = vector.load %arg2[%c0, %c0_0, %c0_1] : memref<1x32x256xf32, #tpu.memory_space<vmem>>, vector<1x32x256xf32>
    %cst = arith.constant dense<0.000000e+00> : vector<1x32xf32>
    %1 = vector.multi_reduction <add>, %0, %cst [2] : vector<1x32x256xf32> to vector<1x32xf32>
    %2 = vector.shape_cast %1 : vector<1x32xf32> to vector<1x32x1xf32>
    %cst_2 = arith.constant dense<0xFF800000> : vector<1x32xf32>
    %3 = vector.multi_reduction <maximumf>, %0, %cst_2 [2] : vector<1x32x256xf32> to vector<1x32xf32>
    %4 = vector.shape_cast %3 : vector<1x32xf32> to vector<1x32x1xf32>
    %c0_i32 = arith.constant 0 : i32
    %5 = arith.cmpi eq, %arg1, %c0_i32 : i32
    %6 = arith.extui %5 : i1 to i32
    %c0_i32_3 = arith.constant 0 : i32
    %7 = arith.cmpi ne, %6, %c0_i32_3 : i32
    scf.if %7 {
      %c0_8 = arith.constant 0 : index
      %c0_9 = arith.constant 0 : index
      %c0_10 = arith.constant 0 : index
      %14 = vector.load %arg6[%c0_8, %c0_9, %c0_10] : memref<1x32x1xf32, #tpu.memory_space<vmem>>, vector<1x32x1xf32>
      tpu.vector_store %arg6[%c0_8, %c0_9, %c0_10], %2 {strides = array<i32>} : memref<1x32x1xf32, #tpu.memory_space<vmem>>, vector<1x32x1xf32>,
      %c0_11 = arith.constant 0 : index
      %c0_12 = arith.constant 0 : index
      %c0_13 = arith.constant 0 : index
      %15 = vector.load %arg7[%c0_11, %c0_12, %c0_13] : memref<1x32x1xf32, #tpu.memory_space<vmem>>, vector<1x32x1xf32>
      tpu.vector_store %arg7[%c0_11, %c0_12, %c0_13], %4 {strides = array<i32>} : memref<1x32x1xf32, #tpu.memory_space<vmem>>, vector<1x32x1xf32>,
    } else {
    }
    %c0_i32_4 = arith.constant 0 : i32
    %8 = arith.cmpi sgt, %arg1, %c0_i32_4 : i32
    %9 = arith.extui %8 : i1 to i32
    %c0_i32_5 = arith.constant 0 : i32
    %10 = arith.cmpi ne, %9, %c0_i32_5 : i32
    scf.if %10 {
      %c0_8 = arith.constant 0 : index
      %c0_9 = arith.constant 0 : index
      %c0_10 = arith.constant 0 : index
      %14 = vector.load %arg6[%c0_8, %c0_9, %c0_10] : memref<1x32x1xf32, #tpu.memory_space<vmem>>, vector<1x32x1xf32>
      %15 = arith.addf %14, %2 : vector<1x32x1xf32>
      %c0_11 = arith.constant 0 : index
      %c0_12 = arith.constant 0 : index
      %c0_13 = arith.constant 0 : index
      %16 = vector.load %arg6[%c0_11, %c0_12, %c0_13] : memref<1x32x1xf32, #tpu.memory_space<vmem>>, vector<1x32x1xf32>
      tpu.vector_store %arg6[%c0_11, %c0_12, %c0_13], %15 {strides = array<i32>} : memref<1x32x1xf32, #tpu.memory_space<vmem>>, vector<1x32x1xf32>,
      %c0_14 = arith.constant 0 : index
      %c0_15 = arith.constant 0 : index
      %c0_16 = arith.constant 0 : index
      %17 = vector.load %arg7[%c0_14, %c0_15, %c0_16] : memref<1x32x1xf32, #tpu.memory_space<vmem>>, vector<1x32x1xf32>
      %18 = arith.maximumf %17, %4 : vector<1x32x1xf32>
      %c0_17 = arith.constant 0 : index
      %c0_18 = arith.constant 0 : index
      %c0_19 = arith.constant 0 : index
      %19 = vector.load %arg7[%c0_17, %c0_18, %c0_19] : memref<1x32x1xf32, #tpu.memory_space<vmem>>, vector<1x32x1xf32>
      tpu.vector_store %arg7[%c0_17, %c0_18, %c0_19], %18 {strides = array<i32>} : memref<1x32x1xf32, #tpu.memory_space<vmem>>, vector<1x32x1xf32>,
    } else {
    }
    %c0_i32_6 = arith.constant 0 : i32
    %11 = arith.cmpi eq, %arg1, %c0_i32_6 : i32
    %12 = arith.extui %11 : i1 to i32
    %c0_i32_7 = arith.constant 0 : i32
    %13 = arith.cmpi ne, %12, %c0_i32_7 : i32
    scf.if %13 {
      %c0_8 = arith.constant 0 : index
      %c0_9 = arith.constant 0 : index
      %14 = vector.load %arg3[%c0_8, %c0_9] : memref<2x32xf32, #tpu.memory_space<vmem>>, vector<2x32xf32>
      %c0_10 = arith.constant 0 : index
      %c0_11 = arith.constant 0 : index
      %15 = vector.load %arg4[%c0_10, %c0_11] : memref<32x2xf32, #tpu.memory_space<vmem>>, vector<32x2xf32>
      %c0_12 = arith.constant 0 : index
      %c0_13 = arith.constant 0 : index
      %c0_14 = arith.constant 0 : index
      %16 = vector.load %arg6[%c0_12, %c0_13, %c0_14] : memref<1x32x1xf32, #tpu.memory_space<vmem>>, vector<1x32x1xf32>
      %17 = vector.shape_cast %16 : vector<1x32x1xf32> to vector<32x1xf32>
      %cst_15 = arith.constant 3.906250e-03 : f32
      %18 = vector.broadcast %cst_15 : f32 to vector<32x1xf32>
      %19 = arith.mulf %17, %18 : vector<32x1xf32>
      %c0_16 = arith.constant 0 : index
      %c0_17 = arith.constant 0 : index
      %20 = vector.load %arg8[%c0_16, %c0_17] : memref<32x2xf32, #tpu.memory_space<vmem>>, vector<32x1xf32>
      tpu.vector_store %arg8[%c0_16, %c0_17], %19 {strides = array<i32>} : memref<32x2xf32, #tpu.memory_space<vmem>>, vector<32x1xf32>,
      %c0_18 = arith.constant 0 : index
      %c0_19 = arith.constant 0 : index
      %c0_20 = arith.constant 0 : index
      %21 = vector.load %arg7[%c0_18, %c0_19, %c0_20] : memref<1x32x1xf32, #tpu.memory_space<vmem>>, vector<1x32x1xf32>
      %22 = vector.shape_cast %21 : vector<1x32x1xf32> to vector<32x1xf32>
      %c0_21 = arith.constant 0 : index
      %c1 = arith.constant 1 : index
      %23 = vector.load %arg8[%c0_21, %c1] : memref<32x2xf32, #tpu.memory_space<vmem>>, vector<32x1xf32>
      tpu.vector_store %arg8[%c0_21, %c1], %22 {strides = array<i32>} : memref<32x2xf32, #tpu.memory_space<vmem>>, vector<32x1xf32>,
      %c0_22 = arith.constant 0 : index
      %c0_23 = arith.constant 0 : index
      %24 = vector.load %arg8[%c0_22, %c0_23] : memref<32x2xf32, #tpu.memory_space<vmem>>, vector<32x2xf32>
      %cst_24 = arith.constant dense<0.000000e+00> : vector<2x2xf32>
      %25 = tpu.matmul %14, %24, %cst_24 {dimension_numbers = #tpu.dot_dimension_numbers<[1], [0], [0], [1], [0, 0, 1, 1], [], []>} : vector<2x32xf32>, vector<32x2xf32>, vector<2x2xf32> -> vector<2x2xf32>
      %cst_25 = arith.constant 0.000000e+00 : f32
      %26 = vector.broadcast %cst_25 : f32 to vector<2x2xf32>
      %27 = arith.maximumf %25, %26 : vector<2x2xf32>
      %cst_26 = arith.constant dense<0.000000e+00> : vector<32x2xf32>
      %28 = tpu.matmul %15, %27, %cst_26 {dimension_numbers = #tpu.dot_dimension_numbers<[1], [0], [0], [1], [0, 0, 1, 1], [], []>} : vector<32x2xf32>, vector<2x2xf32>, vector<32x2xf32> -> vector<32x2xf32>
      %29 = vector.extract_strided_slice %28 {offsets = [0, 0], sizes = [32, 1], strides = [1, 1]} : vector<32x2xf32> to vector<32x1xf32>
      %30 = vector.extract_strided_slice %28 {offsets = [0, 1], sizes = [32, 1], strides = [1, 1]} : vector<32x2xf32> to vector<32x1xf32>
      %31 = arith.addf %29, %30 : vector<32x1xf32>
      %32 = arith.negf %31 : vector<32x1xf32>
      %33 = math.exp %32 : vector<32x1xf32>
      %cst_27 = arith.constant 1.000000e+00 : f32
      %34 = vector.broadcast %cst_27 : f32 to vector<32x1xf32>
      %35 = arith.addf %34, %33 : vector<32x1xf32>
      %36 = arith.divf %34, %35 : vector<32x1xf32>
      %c0_28 = arith.constant 0 : index
      %c0_29 = arith.constant 0 : index
      %c0_30 = arith.constant 0 : index
      %37 = vector.load %arg5[%c0_28, %c0_29, %c0_30] : memref<1x32x1xf32, #tpu.memory_space<vmem>>, vector<1x32x1xf32>
      %38 = vector.shape_cast %37 : vector<1x32x1xf32> to vector<32x1xf32>
      %39 = vector.shape_cast %36 : vector<32x1xf32> to vector<1x32x1xf32>
      tpu.vector_store %arg5[%c0_28, %c0_29, %c0_30], %39 {strides = array<i32>} : memref<1x32x1xf32, #tpu.memory_space<vmem>>, vector<1x32x1xf32>,
    } else {
    }
    return
  }
  func.func @transform_0(%arg0: i32, %arg1: i32) -> (i32, i32, i32) {
    %c0_i32 = arith.constant 0 : i32
    %c0_i32_0 = arith.constant 0 : i32
    return %arg0, %c0_i32, %arg1 : i32, i32, i32
  }
  func.func @transform_1(%arg0: i32, %arg1: i32) -> (i32, i32) {
    %c0_i32 = arith.constant 0 : i32
    %c0_i32_0 = arith.constant 0 : i32
    %c0_i32_1 = arith.constant 0 : i32
    return %c0_i32, %c0_i32_0 : i32, i32
  }
  func.func @transform_2(%arg0: i32, %arg1: i32) -> (i32, i32) {
    %c0_i32 = arith.constant 0 : i32
    %c0_i32_0 = arith.constant 0 : i32
    %c0_i32_1 = arith.constant 0 : i32
    return %c0_i32, %c0_i32_0 : i32, i32
  }
  func.func @transform_3(%arg0: i32, %arg1: i32) -> (i32, i32, i32) {
    %c0_i32 = arith.constant 0 : i32
    %c0_i32_0 = arith.constant 0 : i32
    %c0_i32_1 = arith.constant 0 : i32
    return %arg0, %c0_i32, %c0_i32_0 : i32, i32, i32
  }
}

</mosaic_0001>

<llo_original>
// kernel: tpu_custom_call.1
$region0: #{tpu_custom_call.1}
  #allocation0 [shape = 'u32[]', space=smem, size = 0x4, offset = 0x4, fixed_abs, tag = 'smem constant byte address 0x4 - core index']
  #allocation1 [shape = 'u32[72,128]{1,0:T(1,128)}', space=vmem, size = 0x9000, scoped, tag = 'internal scratch']
  #allocation2 [shape = 'f32[1,32,1]{2,1,0:T(8,128)}', space=vmem, size = 0x4000, scoped, tag = 'scratch operand']
  #allocation3 [shape = 'f32[1,32,1]{2,1,0:T(8,128)}', space=vmem, size = 0x4000, scoped, tag = 'scratch operand']
  #allocation4 [shape = 'f32[32,2]{1,0:T(8,128)}', space=vmem, size = 0x4000, scoped, tag = 'scratch operand']
  %s0 = inlined_call_operand.hbm [shape: f32[2,32,256], index: 0, kind: input, shape index: {}]
  %s1 = inlined_call_operand.vmem [shape: f32[2,32], index: 1, kind: input, shape index: {}]
  %s2 = inlined_call_operand.vmem [shape: f32[32,2], index: 2, kind: input, shape index: {}]
  %s3 = inlined_call_operand.vmem [shape: f32[2,32,1], index: 3, kind: output, shape index: {}]
  %s4 = sld [smem:[#allocation0]]
  $region61: #{tpu_custom_call.1} parent=0
    _
  %s6 = ssub.s32 1, %s4
  %s7 = scalar_select 0, %s6, %s4
  $region1: #{tpu_custom_call.1} parent=0
    #allocation5 [shape = 'u8[65536]{0}', space=vmem, size = 0x10000, scoped, tag = 'input window, operand 0']
    #allocation6 [shape = 's32[2]{0}', space=sflag, size = 0x8, scoped, tag = 'scoped memory for tpu_custom_call.1']
    %8 = vsyncpa [#allocation6], 0
    %s9 = scalar_lea.sflag [#allocation6], 1
    %10 = vsyncpa %s9, 0
    loop: start=0, step=1, limit=4
    $region2: #{tpu_custom_call.1} parent=1 // loop_pre_header
      _
    $region3: #{tpu_custom_call.1} parent=1 // loop_header
      %s12 = sphi 0, %s16
      %p13 = scmp.ge.s32.totalorder %s12, 4
      %s19 = sphi 0, %s31
      %s20 = sphi 0, %s27
      %s21 = sphi 0, %s19
      %s22 = sphi 0, %s20
      %s23 = sphi 0, %s21
      %s24 = sphi 0, %s22
      %s36 = sphi 0, %s38
      %s39 = sphi 0, %s36
      %s40 = sphi 0, %s39
      %s56 = sphi 0, %s40
      %s60 = sphi 0, %s60
      %s62 = sphi 0, %s60
      %s63 = sphi 0, %s62
      %s77 = sphi 0, %s63
      %s81 = sphi 0, %s81
      %s83 = sphi 0, %s81
      %s84 = sphi 0, %s83
      %s98 = sphi 0, %s84
      %s104 = sphi 0, %s106
      %s107 = sphi 0, %s104
      %s108 = sphi 0, %s107
      %s124 = sphi 0, %s108
    $region4: #{tpu_custom_call.1} parent=1 // loop_header_branch
      %15 = sbr.rel (%p13) target = $region8
    $region5: #{tpu_custom_call.1} parent=1 // loop_body
      %s17 = ssub.s32 %s12, 1
      %s18 = ssub.s32 %s12, 2
      %s25 = sadd.s32 1, %s20
      %p26 = scmp.ge.s32.totalorder %s25, 1
      %s27 = scalar_select %p26, 0, %s25
      %s28 = sadd.s32 1, %s19
      %s29 = scalar_select %p26, %s28, %s19
      %p30 = scmp.ge.s32.totalorder %s29, 2
      %s31 = scalar_select %p30, 0, %s29
      %s32 = ssub.s32 %s19, %s31
      %s33 = ssub.s32 %s20, %s27
      %s34 = sor.u32 %s32, %s33
      %p35 = scmp.eq.s32.totalorder %s34, 0
      %s37 = sadd.s32 %s36, 1
      %s38 = scalar_select %p35, %s36, %s37
      %p41 = pneg %p35
      %p42 = scmp.eq.s32.totalorder %s12, 1
      %p43 = por %p41, %p42
      %p44 = scmp.ne.s32.totalorder %s36, %s39
      %p45 = scmp.eq.s32.totalorder %s12, 0
      %p46 = por %p44, %p45
      %p47 = scmp.ne.s32.totalorder %s36, %s39
      %p48 = scmp.eq.s32.totalorder %s17, 1
      %p49 = por %p47, %p48
      %p50 = scmp.ne.s32.totalorder %s39, %s40
      %p51 = scmp.eq.s32.totalorder %s17, 0
      %p52 = por %p50, %p51
      %p53 = scmp.ne.s32.totalorder %s39, %s40
      %p54 = scmp.eq.s32.totalorder %s18, 1
      %p55 = por %p53, %p54
      %p57 = scmp.ne.s32.totalorder %s40, %s56
      %p58 = scmp.eq.s32.totalorder %s18, 0
      %p59 = por %p57, %p58
      %s61 = sadd.s32 %s60, 1
      %p64 = scmp.eq.s32.totalorder %s12, 1
      %p65 = scmp.ne.s32.totalorder %s60, %s62
      %p66 = scmp.eq.s32.totalorder %s12, 0
      %p67 = por %p65, %p66
      %p68 = scmp.ne.s32.totalorder %s60, %s62
      %p69 = scmp.eq.s32.totalorder %s17, 1
      %p70 = por %p68, %p69
      %p71 = scmp.ne.s32.totalorder %s62, %s63
      %p72 = scmp.eq.s32.totalorder %s17, 0
      %p73 = por %p71, %p72
      %p74 = scmp.ne.s32.totalorder %s62, %s63
      %p75 = scmp.eq.s32.totalorder %s18, 1
      %p76 = por %p74, %p75
      %p78 = scmp.ne.s32.totalorder %s63, %s77
      %p79 = scmp.eq.s32.totalorder %s18, 0
      %p80 = por %p78, %p79
      %s82 = sadd.s32 %s81, 1
      %p85 = scmp.eq.s32.totalorder %s12, 1
      %p86 = scmp.ne.s32.totalorder %s81, %s83
      %p87 = scmp.eq.s32.totalorder %s12, 0
      %p88 = por %p86, %p87
      %p89 = scmp.ne.s32.totalorder %s81, %s83
      %p90 = scmp.eq.s32.totalorder %s17, 1
      %p91 = por %p89, %p90
      %p92 = scmp.ne.s32.totalorder %s83, %s84
      %p93 = scmp.eq.s32.totalorder %s17, 0
      %p94 = por %p92, %p93
      %p95 = scmp.ne.s32.totalorder %s83, %s84
      %p96 = scmp.eq.s32.totalorder %s18, 1
      %p97 = por %p95, %p96
      %p99 = scmp.ne.s32.totalorder %s84, %s98
      %p100 = scmp.eq.s32.totalorder %s18, 0
      %p101 = por %p99, %p100
      %s102 = ssub.s32 %s19, %s31
      %p103 = scmp.eq.s32.totalorder %s102, 0
      %s105 = sadd.s32 %s104, 1
      %s106 = scalar_select %p103, %s104, %s105
      %p109 = pneg %p103
      %p110 = scmp.eq.s32.totalorder %s12, 1
      %p111 = por %p109, %p110
      %p112 = scmp.ne.s32.totalorder %s104, %s107
      %p113 = scmp.eq.s32.totalorder %s12, 0
      %p114 = por %p112, %p113
      %p115 = scmp.ne.s32.totalorder %s104, %s107
      %p116 = scmp.eq.s32.totalorder %s17, 1
      %p117 = por %p115, %p116
      %p118 = scmp.ne.s32.totalorder %s107, %s108
      %p119 = scmp.eq.s32.totalorder %s17, 0
      %p120 = por %p118, %p119
      %p121 = scmp.ne.s32.totalorder %s107, %s108
      %p122 = scmp.eq.s32.totalorder %s18, 1
      %p123 = por %p121, %p122
      %p125 = scmp.ne.s32.totalorder %s108, %s124
      %p126 = scmp.eq.s32.totalorder %s18, 0
      %p127 = por %p125, %p126
      %p128 = scmp.le.s32.totalorder 1, %s12
      %p129 = scmp.lt.s32.totalorder %s12, 3
      %p130 = pnand %p128, %p129
      %p131 = pneg %p130
      // Predicated region
      $region9: #{tpu_custom_call.1} parent=5 // pred_check
        _
      $region10: #{tpu_custom_call.1} parent=5 // pred_check_branch
        %133 = sbr.rel (%p130) target = $region12
      $region11: #{tpu_custom_call.1} parent=5 // pred_region
        %s134 = ssub.s32 %s12, 1
        // Predicated region
        $region13: #{tpu_custom_call.1} parent=11 // pred_check
          %p135 = pneg %p73
        $region14: #{tpu_custom_call.1} parent=11 // pred_check_branch
          %137 = sbr.rel (%p135) target = $region16
        $region15: #{tpu_custom_call.1} parent=11 // pred_region
          _
        $region16: #{tpu_custom_call.1} parent=11 // pred_fallthru
          _
        // Predicated region
        $region17: #{tpu_custom_call.1} parent=11 // pred_check
          %p138 = pneg %p94
        $region18: #{tpu_custom_call.1} parent=11 // pred_check_branch
          %140 = sbr.rel (%p138) target = $region20
        $region19: #{tpu_custom_call.1} parent=11 // pred_region
          _
        $region20: #{tpu_custom_call.1} parent=11 // pred_fallthru
          _
      $region12: #{tpu_custom_call.1} parent=5 // pred_fallthru
        _
      %p141 = scmp.lt.s32.totalorder %s12, 2
      // Predicated region
      $region21: #{tpu_custom_call.1} parent=5 // pred_check
        %p142 = pneg %p141
      $region22: #{tpu_custom_call.1} parent=5 // pred_check_branch
        %144 = sbr.rel (%p142) target = $region24
      $region23: #{tpu_custom_call.1} parent=5 // pred_region
        // Predicated region
        $region25: #{tpu_custom_call.1} parent=23 // pred_check
          %p145 = pneg %p46
        $region26: #{tpu_custom_call.1} parent=23 // pred_check_branch
          %147 = sbr.rel (%p145) target = $region28
        $region27: #{tpu_custom_call.1} parent=23 // pred_region
          %s148 = sand.u32 %s36, 1
          %s149 = scalar_lea.sflag [#allocation6], %s148
          %s150 = sand.u32 %s36, 1
          %s151 = smul.addr %s150, 64
          %s152 = scalar_lea.vmem [#allocation5], %s151
          %s153 = smul.u32 2, %s20
          %155 = vsyncadd %s149, 0
          %s156 = smul.addr %s19, 8
          %s157 = sadd.s32 %s153, %s156
          %s158 = smul.addr %s157, 8
          %s159 = scalar_lea.hbm %s0, %s158
          %s160 = sshll.u32 %s159, 4
          %s161 = int_to_ptr.hbm [resolvable:$true] %s160
          %s162 = sshll.u32 %s152, 4
          %s163 = int_to_ptr.vmem [resolvable:$true] %s162
          %168 = dma.hbm_to_vmem [thread:$0]  %s161, 1024, %s163, %s149, 256, 256, 16
        $region28: #{tpu_custom_call.1} parent=23 // pred_fallthru
          _
      $region24: #{tpu_custom_call.1} parent=5 // pred_fallthru
        _
      %p169 = scmp.le.s32.totalorder 1, %s12
      %p170 = scmp.lt.s32.totalorder %s12, 3
      %p171 = pnand %p169, %p170
      %p172 = pneg %p171
      // Predicated region
      $region29: #{tpu_custom_call.1} parent=5 // pred_check
        _
      $region30: #{tpu_custom_call.1} parent=5 // pred_check_branch
        %174 = sbr.rel (%p171) target = $region32
      $region31: #{tpu_custom_call.1} parent=5 // pred_region
        %s175 = ssub.s32 %s12, 1
        %s176 = sand.u32 %s39, 1
        %s177 = scalar_lea.sflag [#allocation6], %s176
        %s178 = sand.u32 %s39, 1
        %s179 = smul.addr %s178, 64
        %s180 = scalar_lea.vmem [#allocation5], %s179
        // Predicated region
        $region33: #{tpu_custom_call.1} parent=31 // pred_check
          %p181 = pneg %p52
        $region34: #{tpu_custom_call.1} parent=31 // pred_check_branch
          %183 = sbr.rel (%p181) target = $region36
        $region35: #{tpu_custom_call.1} parent=31 // pred_region
          %185 = dma.done %s177, 1024
        $region36: #{tpu_custom_call.1} parent=31 // pred_fallthru
          _
        %s186 = sand.u32 %s39, 1
        %s187 = scalar_lea.sflag [#allocation6], %s186
        %s188 = sand.u32 %s39, 1
        %s189 = smul.addr %s188, 64
        %s190 = scalar_lea.vmem [#allocation5], %s189
        %p191 = pneg %p52
        %p192 = pneg %p49
        %p193 = pneg %p73
        %p194 = pneg %p70
        %p195 = pneg %p94
        %p196 = pneg %p91
        %p197 = pneg %p120
        %p198 = pneg %p117
        %p199 = scmp.lt.s32.totalorder %s21, 1
        %s200 = scalar_select %p199, %s21, 1
        %s201 = smul.addr %s200, 4
        %s202 = smul.addr %s201, 8
        %s203 = scalar_lea.vmem %s3, %s202
        %s204 = smul.u32 2, %s22
        %p205 = scmp.lt.s32.totalorder %s21, 1
        %s206 = scalar_select %p205, %s21, 1
        %s207 = smul.addr %s206, 4
        %s208 = smul.addr %s207, 8
        %s209 = scalar_lea.vmem %s3, %s208
        %v210 = vld [vmem:[%s180] sm:$0xff]
        %v211 = vld [vmem:[%s180 + $0x8] sm:$0xff]
        %v212 = vld [vmem:[%s180 + $0x10] sm:$0xff]
        %v213 = vld [vmem:[%s180 + $0x18] sm:$0xff]
        %v214 = vld [vmem:[%s180 + $0x20] sm:$0xff]
        %v215 = vld [vmem:[%s180 + $0x28] sm:$0xff]
        %v216 = vld [vmem:[%s180 + $0x30] sm:$0xff]
        %v217 = vld [vmem:[%s180 + $0x38] sm:$0xff]
        %v218 = vadd.f32 %v210, %v211
        %219 = vadd.xlane.f32.xlu0 %v218
        %v220 = vpop.xlane.xlu0 %219
        %v221 = vadd.f32 %v212, %v213
        %222 = vadd.xlane.f32.xlu0 %v221
        %v223 = vpop.xlane.xlu0 %222
        %v224 = vadd.f32 %v214, %v215
        %225 = vadd.xlane.f32.xlu0 %v224
        %v226 = vpop.xlane.xlu0 %225
        %v227 = vadd.f32 %v216, %v217
        %228 = vadd.xlane.f32.xlu0 %v227
        %v229 = vpop.xlane.xlu0 %228
        %v230 = vmax.f32 %v210, %v211
        %231 = vmax.xlane.f32.xlu0 %v230
        %v232 = vpop.xlane.xlu0 %231
        %v233 = vmax.f32 %v212, %v213
        %234 = vmax.xlane.f32.xlu0 %v233
        %v235 = vpop.xlane.xlu0 %234
        %v236 = vmax.f32 %v214, %v215
        %237 = vmax.xlane.f32.xlu0 %v236
        %v238 = vpop.xlane.xlu0 %237
        %v239 = vmax.f32 %v216, %v217
        %240 = vmax.xlane.f32.xlu0 %v239
        %v241 = vpop.xlane.xlu0 %240
        %p242 = scmp.eq.s32.totalorder %s22, 0
        // Predicated region
        $region37: #{tpu_custom_call.1} parent=31 // pred_check
          %p243 = pneg %p242
        $region38: #{tpu_custom_call.1} parent=31 // pred_check_branch
          %245 = sbr.rel (%p243) target = $region40
        $region39: #{tpu_custom_call.1} parent=31 // pred_region
          %vm246 = vcmask 7168
          %247 = vst.msk [vmem:[#allocation2] sm:$0xff] %vm246, %v220
          %248 = vst.msk [vmem:[#allocation2 + $0x8] sm:$0xff] %vm246, %v223
          %249 = vst.msk [vmem:[#allocation2 + $0x10] sm:$0xff] %vm246, %v226
          %250 = vst.msk [vmem:[#allocation2 + $0x18] sm:$0xff] %vm246, %v229
          %251 = vst.msk [vmem:[#allocation3] sm:$0xff] %vm246, %v232
          %252 = vst.msk [vmem:[#allocation3 + $0x8] sm:$0xff] %vm246, %v235
          %253 = vst.msk [vmem:[#allocation3 + $0x10] sm:$0xff] %vm246, %v238
          %254 = vst.msk [vmem:[#allocation3 + $0x18] sm:$0xff] %vm246, %v241
        $region40: #{tpu_custom_call.1} parent=31 // pred_fallthru
          _
        %p255 = scmp.gt.s32.totalorder %s22, 0
        // Predicated region
        $region41: #{tpu_custom_call.1} parent=31 // pred_check
          %p256 = pneg %p255
        $region42: #{tpu_custom_call.1} parent=31 // pred_check_branch
          %258 = sbr.rel (%p256) target = $region44
        $region43: #{tpu_custom_call.1} parent=31 // pred_region
          %v259 = vld [vmem:[#allocation2] sm:$0xff]
          %v260 = vld [vmem:[#allocation2 + $0x8] sm:$0xff]
          %v261 = vld [vmem:[#allocation2 + $0x10] sm:$0xff]
          %v262 = vld [vmem:[#allocation2 + $0x18] sm:$0xff]
          %v263 = vadd.f32 %v259, %v220
          %v264 = vadd.f32 %v260, %v223
          %v265 = vadd.f32 %v261, %v226
          %v266 = vadd.f32 %v262, %v229
          %vm267 = vcmask 7168
          %268 = vst.msk [vmem:[#allocation2] sm:$0xff] %vm267, %v263
          %269 = vst.msk [vmem:[#allocation2 + $0x8] sm:$0xff] %vm267, %v264
          %270 = vst.msk [vmem:[#allocation2 + $0x10] sm:$0xff] %vm267, %v265
          %271 = vst.msk [vmem:[#allocation2 + $0x18] sm:$0xff] %vm267, %v266
          %v272 = vld [vmem:[#allocation3] sm:$0xff]
          %v273 = vld [vmem:[#allocation3 + $0x8] sm:$0xff]
          %v274 = vld [vmem:[#allocation3 + $0x10] sm:$0xff]
          %v275 = vld [vmem:[#allocation3 + $0x18] sm:$0xff]
          %v276 = vmax.f32 %v272, %v232
          %v277 = vmax.f32 %v273, %v235
          %v278 = vmax.f32 %v274, %v238
          %v279 = vmax.f32 %v275, %v241
          %280 = vst.msk [vmem:[#allocation3] sm:$0xff] %vm267, %v276
          %281 = vst.msk [vmem:[#allocation3 + $0x8] sm:$0xff] %vm267, %v277
          %282 = vst.msk [vmem:[#allocation3 + $0x10] sm:$0xff] %vm267, %v278
          %283 = vst.msk [vmem:[#allocation3 + $0x18] sm:$0xff] %vm267, %v279
        $region44: #{tpu_custom_call.1} parent=31 // pred_fallthru
          _
        // Predicated region
        $region45: #{tpu_custom_call.1} parent=31 // pred_check
          %p284 = pneg %p242
        $region46: #{tpu_custom_call.1} parent=31 // pred_check_branch
          %286 = sbr.rel (%p284) target = $region48
        $region47: #{tpu_custom_call.1} parent=31 // pred_region
          %v287 = vld [vmem:[%s1] sm:$0x3]
          %v288 = vld [vmem:[%s2] sm:$0xff]
          %v289 = vld [vmem:[%s2 + $0x8] sm:$0xff]
          %v290 = vld [vmem:[%s2 + $0x10] sm:$0xff]
          %v291 = vld [vmem:[%s2 + $0x18] sm:$0xff]
          %v292 = vld [vmem:[#allocation2] sm:$0xff]
          %v293 = vld [vmem:[#allocation2 + $0x8] sm:$0xff]
          %v294 = vld [vmem:[#allocation2 + $0x10] sm:$0xff]
          %v295 = vld [vmem:[#allocation2 + $0x18] sm:$0xff]
          %v296 = vmul.f32 %v292, 0.00390625
          %v297 = vmul.f32 %v293, 0.00390625
          %v298 = vmul.f32 %v294, 0.00390625
          %v299 = vmul.f32 %v295, 0.00390625
          %vm300 = vcmask 7168
          %301 = vst.msk [vmem:[#allocation4] sm:$0xff] %vm300, %v296
          %302 = vst.msk [vmem:[#allocation4 + $0x8] sm:$0xff] %vm300, %v297
          %303 = vst.msk [vmem:[#allocation4 + $0x10] sm:$0xff] %vm300, %v298
          %304 = vst.msk [vmem:[#allocation4 + $0x18] sm:$0xff] %vm300, %v299
          %v305 = vld [vmem:[#allocation3] sm:$0xff]
          %v306 = vld [vmem:[#allocation3 + $0x8] sm:$0xff]
          %v307 = vld [vmem:[#allocation3 + $0x10] sm:$0xff]
          %v308 = vld [vmem:[#allocation3 + $0x18] sm:$0xff]
          %313 = vrot.lane.b32.xlu0 %v305, 1
          %v314 = vpop.permute.xlu0 %313
          %315 = vrot.lane.b32.xlu0 %v306, 1
          %v316 = vpop.permute.xlu0 %315
          %317 = vrot.lane.b32.xlu0 %v307, 1
          %v318 = vpop.permute.xlu0 %317
          %319 = vrot.lane.b32.xlu0 %v308, 1
          %v320 = vpop.permute.xlu0 %319
          %vm325 = vcmask 15368
          %326 = vst.msk [vmem:[#allocation4] sm:$0xff] %vm325, %v314
          %327 = vst.msk [vmem:[#allocation4 + $0x8] sm:$0xff] %vm325, %v316
          %328 = vst.msk [vmem:[#allocation4 + $0x10] sm:$0xff] %vm325, %v318
          %329 = vst.msk [vmem:[#allocation4 + $0x18] sm:$0xff] %vm325, %v320
          %v330 = vld [vmem:[#allocation4] sm:$0xff]
          %v331 = vld [vmem:[#allocation4 + $0x8] sm:$0xff]
          %v332 = vld [vmem:[#allocation4 + $0x10] sm:$0xff]
          %v333 = vld [vmem:[#allocation4 + $0x18] sm:$0xff]
          %vm334 = vcmask 261120
          %v336 = vsel %vm334, %v287, 0
          %338 = vmatpush.msra.mxu0 0.0
          %339 = vmatpush.msra.mxu0 0.0
          %340 = vmatpush.msra.mxu0 0.0
          %341 = vmatpush.msra.mxu0 0.0
          %342 = vmatpush.msra.mxu0 0.0
          %343 = vmatpush.msra.mxu0 0.0
          %344 = vmatpush.msra.mxu0 0.0
          %345 = vmatpush.msra.mxu0 0.0
          %346 = vmatpush.msra.mxu0 0.0
          %347 = vmatpush.msra.mxu0 0.0
          %348 = vmatpush.msra.mxu0 0.0
          %349 = vmatpush.msra.mxu0 0.0
          %350 = vmatpush.msra.mxu0 %v333
          %351 = vmatpush.msra.mxu0 %v332
          %352 = vmatpush.msra.mxu0 %v331
          %353 = vmatpush.msra.mxu0 %v330
          %354 = vmatmul.f32.gmra.mxu0 %v336
          %v355 = vpop.f32.mrf.mxu0
          %v356 = vadd.f32 0.0, %v355
          %357 = vdwg.mxu0
          %v358 = vmax.f32 %v356, 0.0
          %vm359 = vcmask 15360
          %v361 = vsel %vm359, %v288, 0
          %v364 = vsel %vm359, %v289, 0
          %v367 = vsel %vm359, %v290, 0
          %v370 = vsel %vm359, %v291, 0
          %vm372 = vcmask 1041408
          %v374 = vsel %vm372, %v358, 0
          %376 = vmatpush.msra.mxu0 0.0
          %377 = vmatpush.msra.mxu0 0.0
          %378 = vmatpush.msra.mxu0 0.0
          %379 = vmatpush.msra.mxu0 0.0
          %380 = vmatpush.msra.mxu0 0.0
          %381 = vmatpush.msra.mxu0 0.0
          %382 = vmatpush.msra.mxu0 0.0
          %383 = vmatpush.msra.mxu0 0.0
          %384 = vmatpush.msra.mxu0 0.0
          %385 = vmatpush.msra.mxu0 0.0
          %386 = vmatpush.msra.mxu0 0.0
          %387 = vmatpush.msra.mxu0 0.0
          %388 = vmatpush.msra.mxu0 0.0
          %389 = vmatpush.msra.mxu0 0.0
          %390 = vmatpush.msra.mxu0 0.0
          %391 = vmatpush.msra.mxu0 %v374
          %392 = vmatmul.f32.gmra.mxu0 %v361
          %v393 = vpop.f32.mrf.mxu0
          %v394 = vadd.f32 0.0, %v393
          %395 = vmatmul.f32.gmra.mxu0 %v364
          %v396 = vpop.f32.mrf.mxu0
          %v397 = vadd.f32 0.0, %v396
          %398 = vmatmul.f32.gmra.mxu0 %v367
          %v399 = vpop.f32.mrf.mxu0
          %v400 = vadd.f32 0.0, %v399
          %401 = vmatmul.f32.gmra.mxu0 %v370
          %v402 = vpop.f32.mrf.mxu0
          %v403 = vadd.f32 0.0, %v402
          %404 = vdwg.mxu0
          %409 = vrot.lane.b32.xlu0 %v394, 127
          %v410 = vpop.permute.xlu0 %409
          %411 = vrot.lane.b32.xlu0 %v397, 127
          %v412 = vpop.permute.xlu0 %411
          %413 = vrot.lane.b32.xlu0 %v400, 127
          %v414 = vpop.permute.xlu0 %413
          %415 = vrot.lane.b32.xlu0 %v403, 127
          %v416 = vpop.permute.xlu0 %415
          %v421 = vadd.f32 %v394, %v410
          %v422 = vadd.f32 %v397, %v412
          %v423 = vadd.f32 %v400, %v414
          %v424 = vadd.f32 %v403, %v416
          %v425 = vxor.u32 %v421, 2147483648
          %v426 = vxor.u32 %v422, 2147483648
          %v427 = vxor.u32 %v423, 2147483648
          %v428 = vxor.u32 %v424, 2147483648
          %v429 = vmul.f32 %v425, 1.442695
          %v430 = vpow.pop %v429
          %v431 = vmul.f32 %v426, 1.442695
          %v432 = vpow.pop %v431
          %v433 = vmul.f32 %v427, 1.442695
          %v434 = vpow.pop %v433
          %v435 = vmul.f32 %v428, 1.442695
          %v436 = vpow.pop %v435
          %v437 = vadd.f32 %v430, 1.0
          %v438 = vadd.f32 %v432, 1.0
          %v439 = vadd.f32 %v434, 1.0
          %v440 = vadd.f32 %v436, 1.0
          %v441 = vrcp.pop %v437
          %v442 = vmul.f32 %v437, %v441
          %v443 = vsub.f32 1.0, %v442
          %v444 = vmul.f32 %v441, %v443
          %v445 = vadd.f32 %v441, %v444
          %vm446 = vweird.f32 %v437
          %vm447 = vweird.f32 %v441
          %vm448 = vmor %vm446, %vm447
          %v449 = vsel %vm448, %v441, %v445
          %v450 = vand.u32 2147483647, %v437
          %vm451 = vcmp.eq.f32.partialorder %v450, 8.507059e+37
          %v452 = vand.u32 %v437, 2147483648
          %v453 = vor.u32 1.1754944e-38, %v452
          %v454 = vsel %vm451, %v453, %v449
          %v455 = vmul.f32 1.0, %v454
          %v456 = vrcp.pop %v438
          %v457 = vmul.f32 %v438, %v456
          %v458 = vsub.f32 1.0, %v457
          %v459 = vmul.f32 %v456, %v458
          %v460 = vadd.f32 %v456, %v459
          %vm461 = vweird.f32 %v438
          %vm462 = vweird.f32 %v456
          %vm463 = vmor %vm461, %vm462
          %v464 = vsel %vm463, %v456, %v460
          %v465 = vand.u32 2147483647, %v438
          %vm466 = vcmp.eq.f32.partialorder %v465, 8.507059e+37
          %v467 = vand.u32 %v438, 2147483648
          %v468 = vor.u32 1.1754944e-38, %v467
          %v469 = vsel %vm466, %v468, %v464
          %v470 = vmul.f32 1.0, %v469
          %v471 = vrcp.pop %v439
          %v472 = vmul.f32 %v439, %v471
          %v473 = vsub.f32 1.0, %v472
          %v474 = vmul.f32 %v471, %v473
          %v475 = vadd.f32 %v471, %v474
          %vm476 = vweird.f32 %v439
          %vm477 = vweird.f32 %v471
          %vm478 = vmor %vm476, %vm477
          %v479 = vsel %vm478, %v471, %v475
          %v480 = vand.u32 2147483647, %v439
          %vm481 = vcmp.eq.f32.partialorder %v480, 8.507059e+37
          %v482 = vand.u32 %v439, 2147483648
          %v483 = vor.u32 1.1754944e-38, %v482
          %v484 = vsel %vm481, %v483, %v479
          %v485 = vmul.f32 1.0, %v484
          %v486 = vrcp.pop %v440
          %v487 = vmul.f32 %v440, %v486
          %v488 = vsub.f32 1.0, %v487
          %v489 = vmul.f32 %v486, %v488
          %v490 = vadd.f32 %v486, %v489
          %vm491 = vweird.f32 %v440
          %vm492 = vweird.f32 %v486
          %vm493 = vmor %vm491, %vm492
          %v494 = vsel %vm493, %v486, %v490
          %v495 = vand.u32 2147483647, %v440
          %vm496 = vcmp.eq.f32.partialorder %v495, 8.507059e+37
          %v497 = vand.u32 %v440, 2147483648
          %v498 = vor.u32 1.1754944e-38, %v497
          %v499 = vsel %vm496, %v498, %v494
          %v500 = vmul.f32 1.0, %v499
          %501 = vst.msk [vmem:[%s209] sm:$0xff] %vm300, %v455
          %502 = vst.msk [vmem:[%s209 + $0x8] sm:$0xff] %vm300, %v470
          %503 = vst.msk [vmem:[%s209 + $0x10] sm:$0xff] %vm300, %v485
          %504 = vst.msk [vmem:[%s209 + $0x18] sm:$0xff] %vm300, %v500
        $region48: #{tpu_custom_call.1} parent=31 // pred_fallthru
          _
        %p505 = scmp.lt.s32.totalorder %s21, 1
        %s506 = scalar_select %p505, %s21, 1
        %s507 = smul.addr %s506, 4
        %s508 = smul.addr %s507, 8
        %s509 = scalar_lea.vmem %s3, %s508
        // Predicated region
        $region49: #{tpu_custom_call.1} parent=31 // pred_check
          %p510 = pneg %p117
        $region50: #{tpu_custom_call.1} parent=31 // pred_check_branch
          %512 = sbr.rel (%p510) target = $region52
        $region51: #{tpu_custom_call.1} parent=31 // pred_region
          _
        $region52: #{tpu_custom_call.1} parent=31 // pred_fallthru
          _
      $region32: #{tpu_custom_call.1} parent=5 // pred_fallthru
        _
      %p513 = scmp.le.s32.totalorder 2, %s12
      // Predicated region
      $region53: #{tpu_custom_call.1} parent=5 // pred_check
        %p514 = pneg %p513
      $region54: #{tpu_custom_call.1} parent=5 // pred_check_branch
        %516 = sbr.rel (%p514) target = $region56
      $region55: #{tpu_custom_call.1} parent=5 // pred_region
        %s517 = ssub.s32 %s12, 2
        // Predicated region
        $region57: #{tpu_custom_call.1} parent=55 // pred_check
          %p518 = pneg %p123
        $region58: #{tpu_custom_call.1} parent=55 // pred_check_branch
          %520 = sbr.rel (%p518) target = $region60
        $region59: #{tpu_custom_call.1} parent=55 // pred_region
          %p521 = scmp.lt.s32.totalorder %s23, 1
          %s522 = scalar_select %p521, %s23, 1
          %s523 = smul.addr %s522, 4
          %s524 = smul.addr %s523, 8
          %s525 = scalar_lea.vmem %s3, %s524
        $region60: #{tpu_custom_call.1} parent=55 // pred_fallthru
          _
      $region56: #{tpu_custom_call.1} parent=5 // pred_fallthru
        _
    $region6: #{tpu_custom_call.1} parent=1 // loop_footer
      %s16 = sadd.s32 1, %s12
    $region7: #{tpu_custom_call.1} parent=1 // loop_footer_branch
      %11 = sbr.rel target = $region3
    $region8: #{tpu_custom_call.1} parent=1 // loop_exit
      _
    %526 = vsyncpa [#allocation6], 1
    %s527 = scalar_lea.sflag [#allocation6], 1
    %528 = vsyncpa %s527, 1

</llo_original>
